<compile_context>
chip_gen: v6e
topology: v6e:2x2x1
jax: 0.10.0
libtpu: 0.0.40
codegen_flags: <defaults>
</compile_context>

<pallas_src>
import functools

import jax
import jax.numpy as jnp
from jax.experimental import pallas as pl
from jax.experimental.pallas import tpu as pltpu


def _round_up(x, m):
    return (x + m - 1) // m * m


def _decoder_kernel(*refs, n_fc):
    """Fused Decoder forward for one batch tile.

    refs layout (inputs then outputs):
      x_ref (TB, d0), lib_ref (TB, 1),
      [w_i (d_i, d_{i+1}), shift_i (1, d_{i+1})] * n_fc,   folded Linear+BN
      w_out (d_h, d_out), b_out (1, d_out),                px_scale_decoder Linear
      scale_out_ref (TB, d_out), rate_out_ref (TB, d_out)
    """
    x_ref, lib_ref = refs[0], refs[1]
    scale_out_ref, rate_out_ref = refs[-2], refs[-1]

    h = x_ref[...]
    idx = 2
    for _ in range(n_fc):
        w = refs[idx][...]
        s = refs[idx + 1][...]
        idx += 2
        h = jnp.dot(h, w, preferred_element_type=jnp.float32) + s
        h = jnp.maximum(h, 0.0)  # ReLU  (Dropout p=0 -> identity)

    w_out = refs[idx][...]
    b_out = refs[idx + 1][...]
    logits = jnp.dot(h, w_out, preferred_element_type=jnp.float32) + b_out

    # Numerically stable softmax over genes. Padded gene columns carry a
    # -1e30 bias, so exp(...) == 0 there and the row sum is exact.
    m = jnp.max(logits, axis=-1, keepdims=True)
    e = jnp.exp(logits - m)
    denom = jnp.sum(e, axis=-1, keepdims=True)
    px_scale = e / denom

    px_rate = jnp.exp(lib_ref[...]) * px_scale

    scale_out_ref[...] = px_scale.astype(scale_out_ref.dtype)
    rate_out_ref[...] = px_rate.astype(rate_out_ref.dtype)


def decoder_forward(z, library, params, *, eps=1e-3, tile_b=256):
    """Decoder.forward('gene', z, library) -> (px_scale, px_rate, None)."""
    B, n_in = z.shape
    fc_params = params["fc"]
    w_out = params["w_out"]
    b_out = params["b_out"]
    n_hidden, n_output = w_out.shape

    # ---- fold Linear bias + eval-mode BatchNorm into (W', shift') ----------
    folded = []
    for p in fc_params:
        scale = p["gamma"] / jnp.sqrt(p["running_var"] + eps)
        shift = p["beta"] - p["running_mean"] * scale
        w_f = p["w"] * scale[None, :]
        s_f = p["b"] * scale + shift
        folded.append((w_f, s_f))

    # ---- pad feature dims to 128-lane multiples, batch to the tile size ----
    dims = [n_in] + [w.shape[1] for w, _ in folded] + [n_output]
    dims_p = [_round_up(d, 128) for d in dims]

    TB = tile_b if B >= tile_b else _round_up(B, 8)
    B_p = _round_up(B, TB)

    x_p = jnp.zeros((B_p, dims_p[0]), jnp.float32).at[:B, :n_in].set(z)
    lib_p = jnp.zeros((B_p, 1), jnp.float32).at[:B, :].set(library)

    padded_inputs = []
    in_specs = [
        pl.BlockSpec((TB, dims_p[0]), lambda i: (i, 0)),  # activations: tiled over batch
        pl.BlockSpec((TB, 1), lambda i: (i, 0)),          # library size per cell
    ]

    for li, (w_f, s_f) in enumerate(folded):
        dp_in, dp_out = dims_p[li], dims_p[li + 1]
        w_pad = jnp.zeros((dp_in, dp_out), jnp.float32)
        w_pad = w_pad.at[: w_f.shape[0], : w_f.shape[1]].set(w_f)
        s_pad = jnp.zeros((1, dp_out), jnp.float32).at[0, : s_f.shape[0]].set(s_f)
        padded_inputs += [w_pad, s_pad]
        in_specs += [
            pl.BlockSpec((dp_in, dp_out), lambda i: (0, 0)),  # weights stay resident
            pl.BlockSpec((1, dp_out), lambda i: (0, 0)),
        ]

    dp_h, dp_o = dims_p[-2], dims_p[-1]
    w_out_pad = jnp.zeros((dp_h, dp_o), jnp.float32).at[:n_hidden, :n_output].set(w_out)
    # Padded gene columns -> huge negative bias -> softmax weight exactly 0.
    b_out_pad = jnp.full((1, dp_o), -1e30, jnp.float32).at[0, :n_output].set(b_out)
    padded_inputs += [w_out_pad, b_out_pad]
    in_specs += [
        pl.BlockSpec((dp_h, dp_o), lambda i: (0, 0)),
        pl.BlockSpec((1, dp_o), lambda i: (0, 0)),
    ]

    # ---- cost / VMEM bookkeeping -------------------------------------------
    flops = 2 * B_p * sum(dims_p[i] * dims_p[i + 1] for i in range(len(dims_p) - 1))
    transcendentals = B_p * (dp_o + 1)  # softmax exps + exp(library)
    param_elems = int(sum(int(a.size) for a in padded_inputs))
    bytes_accessed = 4 * (B_p * dims_p[0] + B_p + param_elems + 2 * B_p * dp_o)

    max_dim = max(dims_p)
    tile_bytes = 4 * (
        TB * dims_p[0] + TB            # x tile + library tile
        + param_elems                  # resident weights / shifts
        + 2 * TB * dp_o                # two output tiles
        + 3 * TB * max_dim             # live intermediates (h, logits, exp)
    )
    vmem_limit = max(min(2 * tile_bytes + (1 << 20), 56 * 1024 * 1024), 4 * 1024 * 1024)

    kernel = functools.partial(_decoder_kernel, n_fc=len(folded))

    px_scale_p, px_rate_p = pl.pallas_call(
        kernel,
        out_shape=(
            jax.ShapeDtypeStruct((B_p, dp_o), jnp.float32),
            jax.ShapeDtypeStruct((B_p, dp_o), jnp.float32),
        ),
        grid=(B_p // TB,),
        in_specs=in_specs,
        out_specs=(
            pl.BlockSpec((TB, dp_o), lambda i: (i, 0)),
            pl.BlockSpec((TB, dp_o), lambda i: (i, 0)),
        ),
        compiler_params=pltpu.CompilerParams(
            dimension_semantics=("parallel",),   # batch tiles shard across TCs on v7x
            vmem_limit_bytes=int(vmem_limit),
        ),
        cost_estimate=pl.CostEstimate(
            flops=int(flops),
            transcendentals=int(transcendentals),
            bytes_accessed=int(bytes_accessed),
        ),
    )(x_p, lib_p, *padded_inputs)

    px_scale = px_scale_p[:B, :n_output]
    px_rate = px_rate_p[:B, :n_output]
    return px_scale, px_rate, None  # dispersion ('gene') does not affect this forward


def init_decoder_params(key, n_input, n_output, n_layers=1, n_hidden=128):
    """Deterministic params mirroring Decoder.__init__ shapes (W stored as (n_in, n_out))."""
    layers_dim = [n_input] + (n_layers - 1) * [n_hidden] + [n_hidden]
    fc = []
    for din, dout in zip(layers_dim[:-1], layers_dim[1:]):
        key, kw, kb, kg, kbeta, km, kv = jax.random.split(key, 7)
        bound = 1.0 / jnp.sqrt(jnp.float32(din))
        w = jax.random.uniform(kw, (din, dout), jnp.float32, -bound, bound)
        b = jax.random.uniform(kb, (dout,), jnp.float32, -bound, bound)
        gamma = 1.0 + 0.1 * jax.random.normal(kg, (dout,), jnp.float32)
        beta = 0.1 * jax.random.normal(kbeta, (dout,), jnp.float32)
        running_mean = 0.05 * jax.random.normal(km, (dout,), jnp.float32)
        running_var = 1.0 + 0.1 * jax.random.uniform(kv, (dout,), jnp.float32)
        fc.append(dict(w=w, b=b, gamma=gamma, beta=beta,
                       running_mean=running_mean, running_var=running_var))
    key, kwo, kbo = jax.random.split(key, 3)
    bound = 1.0 / jnp.sqrt(jnp.float32(n_hidden))
    w_out = jax.random.uniform(kwo, (n_hidden, n_output), jnp.float32, -bound, bound)
    b_out = jax.random.uniform(kbo, (n_output,), jnp.float32, -bound, bound)
    return dict(fc=fc, w_out=w_out, b_out=b_out)


def decoder_reference(z, library, params, *, eps=1e-3):
    """Pure-JAX reference (eval-mode torch semantics)."""
    x = z
    for p in params["fc"]:
        h = x @ p["w"] + p["b"]
        h = (h - p["running_mean"]) / jnp.sqrt(p["running_var"] + eps)
        h = h * p["gamma"] + p["beta"]
        x = jnp.maximum(h, 0.0)
    logits = x @ params["w_out"] + params["b_out"]
    px_scale = jax.nn.softmax(logits, axis=-1)
    px_rate = jnp.exp(library) * px_scale
    return px_scale, px_rate, None


if __name__ == "__main__":
    key = jax.random.PRNGKey(0)
    k_z, k_lib, k_p = jax.random.split(key, 3)

    # Small shapes consistent with the module: latent=16, hidden=128 (module
    # default), 200 output genes (exercises 128-lane padding), 2 FC layers.
    batch, n_input, n_output, n_layers, n_hidden = 8, 16, 200, 2, 128
    z = jax.random.normal(k_z, (batch, n_input), jnp.float32)
    library = 1.0 + 0.5 * jax.random.normal(k_lib, (batch, 1), jnp.float32)
    params = init_decoder_params(k_p, n_input, n_output,
                                 n_layers=n_layers, n_hidden=n_hidden)

    px_scale, px_rate, disp = decoder_forward(z, library, params)
    px_scale, px_rate = jax.block_until_ready((px_scale, px_rate))

    ref_scale, ref_rate, _ = decoder_reference(z, library, params)
    assert px_scale.shape == (batch, n_output), px_scale.shape
    assert px_rate.shape == (batch, n_output), px_rate.shape
    assert disp is None
    assert jnp.allclose(jnp.sum(px_scale, axis=-1), 1.0, atol=1e-5), "softmax rows must sum to 1"
    assert jnp.allclose(px_scale, ref_scale, atol=1e-5, rtol=1e-3), "px_scale mismatch"
    assert jnp.allclose(px_rate, ref_rate, atol=1e-5, rtol=1e-3), "px_rate mismatch"

    print("KERNEL_OK")
</pallas_src>

<mosaic_0001>
module attributes {stable_mosaic.version = 11 : i64} {
  func.func @_decoder_kernel(%arg0: i32, %arg1: memref<8x128xf32, #tpu.memory_space<vmem>>, %arg2: memref<8x1xf32, #tpu.memory_space<vmem>>, %arg3: memref<128x128xf32, #tpu.memory_space<vmem>>, %arg4: memref<1x128xf32, #tpu.memory_space<vmem>>, %arg5: memref<128x128xf32, #tpu.memory_space<vmem>>, %arg6: memref<1x128xf32, #tpu.memory_space<vmem>>, %arg7: memref<128x256xf32, #tpu.memory_space<vmem>>, %arg8: memref<1x256xf32, #tpu.memory_space<vmem>>, %arg9: memref<8x256xf32, #tpu.memory_space<vmem>>, %arg10: memref<8x256xf32, #tpu.memory_space<vmem>>) attributes {dimension_semantics = [#tpu.dimension_semantics<parallel>], iteration_bounds = array<i64: 1>, scalar_prefetch = 0 : i64, scratch_operands = 0 : i64, tpu.core_type = #tpu.core_type<tc>, window_params = [{transform_indices = @transform_0, window_bounds = array<i64: 8, 128>}, {transform_indices = @transform_1, window_bounds = array<i64: 8, 1>}, {pipeline_mode = #tpu.pipeline_mode<synchronous>, transform_indices = @transform_2, window_bounds = array<i64: 128, 128>}, {pipeline_mode = #tpu.pipeline_mode<synchronous>, transform_indices = @transform_3, window_bounds = array<i64: 1, 128>}, {pipeline_mode = #tpu.pipeline_mode<synchronous>, transform_indices = @transform_4, window_bounds = array<i64: 128, 128>}, {pipeline_mode = #tpu.pipeline_mode<synchronous>, transform_indices = @transform_5, window_bounds = array<i64: 1, 128>}, {pipeline_mode = #tpu.pipeline_mode<synchronous>, transform_indices = @transform_6, window_bounds = array<i64: 128, 256>}, {pipeline_mode = #tpu.pipeline_mode<synchronous>, transform_indices = @transform_7, window_bounds = array<i64: 1, 256>}, {transform_indices = @transform_8, window_bounds = array<i64: 8, 256>}, {transform_indices = @transform_9, window_bounds = array<i64: 8, 256>}]} {
    %c0 = arith.constant 0 : index
    %c0_0 = arith.constant 0 : index
    %0 = vector.load %arg1[%c0, %c0_0] : memref<8x128xf32, #tpu.memory_space<vmem>>, vector<8x128xf32>
    %c0_1 = arith.constant 0 : index
    %c0_2 = arith.constant 0 : index
    %1 = vector.load %arg3[%c0_1, %c0_2] : memref<128x128xf32, #tpu.memory_space<vmem>>, vector<128x128xf32>
    %c0_3 = arith.constant 0 : index
    %c0_4 = arith.constant 0 : index
    %2 = vector.load %arg4[%c0_3, %c0_4] : memref<1x128xf32, #tpu.memory_space<vmem>>, vector<1x128xf32>
    %cst = arith.constant dense<0.000000e+00> : vector<8x128xf32>
    %3 = tpu.matmul %0, %1, %cst {dimension_numbers = #tpu.dot_dimension_numbers<[1], [0], [0], [1], [0, 0, 1, 1], [], []>} : vector<8x128xf32>, vector<128x128xf32>, vector<8x128xf32> -> vector<8x128xf32>
    %4 = vector.broadcast %2 : vector<1x128xf32> to vector<8x128xf32>
    %5 = arith.addf %3, %4 : vector<8x128xf32>
    %cst_5 = arith.constant 0.000000e+00 : f32
    %6 = vector.broadcast %cst_5 : f32 to vector<8x128xf32>
    %7 = arith.maximumf %5, %6 : vector<8x128xf32>
    %c0_6 = arith.constant 0 : index
    %c0_7 = arith.constant 0 : index
    %8 = vector.load %arg5[%c0_6, %c0_7] : memref<128x128xf32, #tpu.memory_space<vmem>>, vector<128x128xf32>
    %c0_8 = arith.constant 0 : index
    %c0_9 = arith.constant 0 : index
    %9 = vector.load %arg6[%c0_8, %c0_9] : memref<1x128xf32, #tpu.memory_space<vmem>>, vector<1x128xf32>
    %cst_10 = arith.constant dense<0.000000e+00> : vector<8x128xf32>
    %10 = tpu.matmul %7, %8, %cst_10 {dimension_numbers = #tpu.dot_dimension_numbers<[1], [0], [0], [1], [0, 0, 1, 1], [], []>} : vector<8x128xf32>, vector<128x128xf32>, vector<8x128xf32> -> vector<8x128xf32>
    %11 = vector.broadcast %9 : vector<1x128xf32> to vector<8x128xf32>
    %12 = arith.addf %10, %11 : vector<8x128xf32>
    %cst_11 = arith.constant 0.000000e+00 : f32
    %13 = vector.broadcast %cst_11 : f32 to vector<8x128xf32>
    %14 = arith.maximumf %12, %13 : vector<8x128xf32>
    %c0_12 = arith.constant 0 : index
    %c0_13 = arith.constant 0 : index
    %15 = vector.load %arg7[%c0_12, %c0_13] : memref<128x256xf32, #tpu.memory_space<vmem>>, vector<128x256xf32>
    %c0_14 = arith.constant 0 : index
    %c0_15 = arith.constant 0 : index
    %16 = vector.load %arg8[%c0_14, %c0_15] : memref<1x256xf32, #tpu.memory_space<vmem>>, vector<1x256xf32>
    %cst_16 = arith.constant dense<0.000000e+00> : vector<8x256xf32>
    %17 = tpu.matmul %14, %15, %cst_16 {dimension_numbers = #tpu.dot_dimension_numbers<[1], [0], [0], [1], [0, 0, 1, 1], [], []>} : vector<8x128xf32>, vector<128x256xf32>, vector<8x256xf32> -> vector<8x256xf32>
    %18 = vector.broadcast %16 : vector<1x256xf32> to vector<8x256xf32>
    %19 = arith.addf %17, %18 : vector<8x256xf32>
    %cst_17 = arith.constant dense<0xFF800000> : vector<8xf32>
    %20 = vector.multi_reduction <maximumf>, %19, %cst_17 [1] : vector<8x256xf32> to vector<8xf32>
    %21 = vector.shape_cast %20 : vector<8xf32> to vector<8x1xf32>
    %22 = vector.broadcast %21 : vector<8x1xf32> to vector<8x256xf32>
    %23 = arith.subf %19, %22 : vector<8x256xf32>
    %24 = math.exp %23 : vector<8x256xf32>
    %cst_18 = arith.constant dense<0.000000e+00> : vector<8xf32>
    %25 = vector.multi_reduction <add>, %24, %cst_18 [1] : vector<8x256xf32> to vector<8xf32>
    %26 = vector.shape_cast %25 : vector<8xf32> to vector<8x1xf32>
    %27 = vector.broadcast %26 : vector<8x1xf32> to vector<8x256xf32>
    %28 = arith.divf %24, %27 : vector<8x256xf32>
    %c0_19 = arith.constant 0 : index
    %c0_20 = arith.constant 0 : index
    %29 = vector.load %arg2[%c0_19, %c0_20] : memref<8x1xf32, #tpu.memory_space<vmem>>, vector<8x1xf32>
    %30 = math.exp %29 : vector<8x1xf32>
    %31 = vector.broadcast %30 : vector<8x1xf32> to vector<8x256xf32>
    %32 = arith.mulf %31, %28 : vector<8x256xf32>
    %c0_21 = arith.constant 0 : index
    %c0_22 = arith.constant 0 : index
    %33 = vector.load %arg9[%c0_21, %c0_22] : memref<8x256xf32, #tpu.memory_space<vmem>>, vector<8x256xf32>
    tpu.vector_store %arg9[%c0_21, %c0_22], %28 {strides = array<i32>} : memref<8x256xf32, #tpu.memory_space<vmem>>, vector<8x256xf32>,
    %c0_23 = arith.constant 0 : index
    %c0_24 = arith.constant 0 : index
    %34 = vector.load %arg10[%c0_23, %c0_24] : memref<8x256xf32, #tpu.memory_space<vmem>>, vector<8x256xf32>
    tpu.vector_store %arg10[%c0_23, %c0_24], %32 {strides = array<i32>} : memref<8x256xf32, #tpu.memory_space<vmem>>, vector<8x256xf32>,
    return
  }
  func.func @transform_0(%arg0: i32) -> (i32, i32) {
    %c0_i32 = arith.constant 0 : i32
    %c0_i32_0 = arith.constant 0 : i32
    return %arg0, %c0_i32 : i32, i32
  }
  func.func @transform_1(%arg0: i32) -> (i32, i32) {
    %c0_i32 = arith.constant 0 : i32
    %c0_i32_0 = arith.constant 0 : i32
    return %arg0, %c0_i32 : i32, i32
  }
  func.func @transform_2(%arg0: i32) -> (i32, i32) {
    %c0_i32 = arith.constant 0 : i32
    %c0_i32_0 = arith.constant 0 : i32
    %c0_i32_1 = arith.constant 0 : i32
    return %c0_i32, %c0_i32_0 : i32, i32
  }
  func.func @transform_3(%arg0: i32) -> (i32, i32) {
    %c0_i32 = arith.constant 0 : i32
    %c0_i32_0 = arith.constant 0 : i32
    %c0_i32_1 = arith.constant 0 : i32
    return %c0_i32, %c0_i32_0 : i32, i32
  }
  func.func @transform_4(%arg0: i32) -> (i32, i32) {
    %c0_i32 = arith.constant 0 : i32
    %c0_i32_0 = arith.constant 0 : i32
    %c0_i32_1 = arith.constant 0 : i32
    return %c0_i32, %c0_i32_0 : i32, i32
  }
  func.func @transform_5(%arg0: i32) -> (i32, i32) {
    %c0_i32 = arith.constant 0 : i32
    %c0_i32_0 = arith.constant 0 : i32
    %c0_i32_1 = arith.constant 0 : i32
    return %c0_i32, %c0_i32_0 : i32, i32
  }
  func.func @transform_6(%arg0: i32) -> (i32, i32) {
    %c0_i32 = arith.constant 0 : i32
    %c0_i32_0 = arith.constant 0 : i32
    %c0_i32_1 = arith.constant 0 : i32
    return %c0_i32, %c0_i32_0 : i32, i32
  }
  func.func @transform_7(%arg0: i32) -> (i32, i32) {
    %c0_i32 = arith.constant 0 : i32
    %c0_i32_0 = arith.constant 0 : i32
    %c0_i32_1 = arith.constant 0 : i32
    return %c0_i32, %c0_i32_0 : i32, i32
  }
  func.func @transform_8(%arg0: i32) -> (i32, i32) {
    %c0_i32 = arith.constant 0 : i32
    %c0_i32_0 = arith.constant 0 : i32
    return %arg0, %c0_i32 : i32, i32
  }
  func.func @transform_9(%arg0: i32) -> (i32, i32) {
    %c0_i32 = arith.constant 0 : i32
    %c0_i32_0 = arith.constant 0 : i32
    return %arg0, %c0_i32 : i32, i32
  }
}

</mosaic_0001>

<llo_original>
// kernel: tpu_custom_call.1
$region0: #{tpu_custom_call.1}
  #allocation0 [shape = 'u32[]', space=smem, size = 0x4, offset = 0x4, fixed_abs, tag = 'smem constant byte address 0x4 - core index']
  #allocation1 [shape = 'u32[144,128]{1,0:T(1,128)}', space=vmem, size = 0x12000, scoped, tag = 'internal scratch']
  %s0 = inlined_call_operand.vmem [shape: f32[8,128], index: 0, kind: input, shape index: {}]
  %s1 = inlined_call_operand.vmem [shape: f32[8,1], index: 1, kind: input, shape index: {}]
  %s2 = inlined_call_operand.hbm [shape: f32[128,128], index: 2, kind: input, shape index: {}]
  %s3 = inlined_call_operand.vmem [shape: f32[1,128], index: 3, kind: input, shape index: {}]
  %s4 = inlined_call_operand.hbm [shape: f32[128,128], index: 4, kind: input, shape index: {}]
  %s5 = inlined_call_operand.vmem [shape: f32[1,128], index: 5, kind: input, shape index: {}]
  %s6 = inlined_call_operand.hbm [shape: f32[128,256], index: 6, kind: input, shape index: {}]
  %s7 = inlined_call_operand.vmem [shape: f32[1,256], index: 7, kind: input, shape index: {}]
  %s8 = inlined_call_operand.hbm [shape: f32[8,256], index: 8, kind: output, shape index: {0}]
  %s9 = inlined_call_operand.hbm [shape: f32[8,256], index: 9, kind: output, shape index: {1}]
  %10 = xla_tuple %s8, %s9
  %s11 = sld [smem:[#allocation0]]
  $region62: #{tpu_custom_call.1} parent=0
    _
  %s13 = ssub.s32 1, %s11
  %s14 = scalar_select 0, %s13, %s11
  $region1: #{tpu_custom_call.1} parent=0
    #allocation2 [shape = 'u8[65536]{0}', space=vmem, size = 0x10000, scoped, tag = 'input window, operand 2, single buffered']
    #allocation3 [shape = 's32[1]{0}', space=sflag, size = 0x4, scoped, tag = 'scoped memory for tpu_custom_call.1']
    #allocation4 [shape = 's32[1]{0}', space=sflag, size = 0x4, scoped, tag = 'scoped memory for tpu_custom_call.1']
    #allocation5 [shape = 'u8[65536]{0}', space=vmem, size = 0x10000, scoped, tag = 'input window, operand 4, single buffered']
    #allocation6 [shape = 's32[1]{0}', space=sflag, size = 0x4, scoped, tag = 'scoped memory for tpu_custom_call.1']
    #allocation7 [shape = 'u8[131072]{0}', space=vmem, size = 0x20000, scoped, tag = 'input window, operand 6, single buffered']
    #allocation8 [shape = 'u8[8192]{0}', space=vmem, size = 0x2000, scoped, tag = 'output window, operand 0, single buffered']
    #allocation9 [shape = 'u8[8192]{0}', space=vmem, size = 0x2000, scoped, tag = 'output window, operand 1, single buffered']
    #allocation10 [shape = 's32[1]{0}', space=sflag, size = 0x4, scoped, tag = 'scoped memory for tpu_custom_call.1']
    %15 = vsyncpa [#allocation3], 0
    %16 = vsyncpa [#allocation6], 0
    %17 = vsyncpa [#allocation4], 0
    %18 = vsyncpa [#allocation10], 0
    // Predicated region
    $region2: #{tpu_custom_call.1} parent=1 // pred_check
      _
    $region3: #{tpu_custom_call.1} parent=1 // pred_check_branch
      %20 = sbr.rel (0) target = $region5
    $region4: #{tpu_custom_call.1} parent=1 // pred_region
      _
    $region5: #{tpu_custom_call.1} parent=1 // pred_fallthru
      _
    // Predicated region
    $region6: #{tpu_custom_call.1} parent=1 // pred_check
      _
    $region7: #{tpu_custom_call.1} parent=1 // pred_check_branch
      %22 = sbr.rel (0) target = $region9
    $region8: #{tpu_custom_call.1} parent=1 // pred_region
      _
    $region9: #{tpu_custom_call.1} parent=1 // pred_fallthru
      _
    // Predicated region
    $region10: #{tpu_custom_call.1} parent=1 // pred_check
      _
    $region11: #{tpu_custom_call.1} parent=1 // pred_check_branch
      %24 = sbr.rel (0) target = $region13
    $region12: #{tpu_custom_call.1} parent=1 // pred_region
      %s26 = ssub.s32 2048, 2048
      %27 = vsyncadd [#allocation3], %s26
      %s28 = sshll.u32 [#allocation2], 4
      %s29 = int_to_ptr.vmem [resolvable:$true] %s28
      %34 = dma.hbm_to_vmem [thread:$0]  %s2, 2048, %s29, [#allocation3], 128, 128, 8
    $region13: #{tpu_custom_call.1} parent=1 // pred_fallthru
      _
    // Predicated region
    $region14: #{tpu_custom_call.1} parent=1 // pred_check
      _
    $region15: #{tpu_custom_call.1} parent=1 // pred_check_branch
      %36 = sbr.rel (0) target = $region17
    $region16: #{tpu_custom_call.1} parent=1 // pred_region
      _
    $region17: #{tpu_custom_call.1} parent=1 // pred_fallthru
      _
    // Predicated region
    $region18: #{tpu_custom_call.1} parent=1 // pred_check
      _
    $region19: #{tpu_custom_call.1} parent=1 // pred_check_branch
      %38 = sbr.rel (0) target = $region21
    $region20: #{tpu_custom_call.1} parent=1 // pred_region
      %s40 = ssub.s32 2048, 2048
      %41 = vsyncadd [#allocation6], %s40
      %s42 = sshll.u32 [#allocation5], 4
      %s43 = int_to_ptr.vmem [resolvable:$true] %s42
      %48 = dma.hbm_to_vmem [thread:$0]  %s4, 2048, %s43, [#allocation6], 128, 128, 8
    $region21: #{tpu_custom_call.1} parent=1 // pred_fallthru
      _
    // Predicated region
    $region22: #{tpu_custom_call.1} parent=1 // pred_check
      _
    $region23: #{tpu_custom_call.1} parent=1 // pred_check_branch
      %50 = sbr.rel (0) target = $region25
    $region24: #{tpu_custom_call.1} parent=1 // pred_region
      _
    $region25: #{tpu_custom_call.1} parent=1 // pred_fallthru
      _
    // Predicated region
    $region26: #{tpu_custom_call.1} parent=1 // pred_check
      _
    $region27: #{tpu_custom_call.1} parent=1 // pred_check_branch
      %52 = sbr.rel (0) target = $region29
    $region28: #{tpu_custom_call.1} parent=1 // pred_region
      %s54 = ssub.s32 4096, 4096
      %55 = vsyncadd [#allocation6], %s54
      %s56 = sshll.u32 [#allocation7], 4
      %s57 = int_to_ptr.vmem [resolvable:$true] %s56
      %62 = dma.hbm_to_vmem [thread:$0]  %s6, 4096, %s57, [#allocation6], 256, 256, 16
    $region29: #{tpu_custom_call.1} parent=1 // pred_fallthru
      _
    // Predicated region
    $region30: #{tpu_custom_call.1} parent=1 // pred_check
      _
    $region31: #{tpu_custom_call.1} parent=1 // pred_check_branch
      %64 = sbr.rel (0) target = $region33
    $region32: #{tpu_custom_call.1} parent=1 // pred_region
      _
    $region33: #{tpu_custom_call.1} parent=1 // pred_fallthru
      _
    // Predicated region
    $region34: #{tpu_custom_call.1} parent=1 // pred_check
      _
    $region35: #{tpu_custom_call.1} parent=1 // pred_check_branch
      %66 = sbr.rel (0) target = $region37
    $region36: #{tpu_custom_call.1} parent=1 // pred_region
      %67 = dma.done [#allocation3], 2048
    $region37: #{tpu_custom_call.1} parent=1 // pred_fallthru
      _
    // Predicated region
    $region38: #{tpu_custom_call.1} parent=1 // pred_check
      _
    $region39: #{tpu_custom_call.1} parent=1 // pred_check_branch
      %69 = sbr.rel (0) target = $region41
    $region40: #{tpu_custom_call.1} parent=1 // pred_region
      %70 = dma.done [#allocation6], 2048
    $region41: #{tpu_custom_call.1} parent=1 // pred_fallthru
      _
    // Predicated region
    $region42: #{tpu_custom_call.1} parent=1 // pred_check
      _
    $region43: #{tpu_custom_call.1} parent=1 // pred_check_branch
      %72 = sbr.rel (0) target = $region45
    $region44: #{tpu_custom_call.1} parent=1 // pred_region
      %73 = dma.done [#allocation6], 4096
    $region45: #{tpu_custom_call.1} parent=1 // pred_fallthru
      _
    %v74 = vld [vmem:[%s0] sm:$0xff]
    %v75 = vld [vmem:[#allocation2] sm:$0xff]
    %v76 = vld [vmem:[#allocation2 + $0x8] sm:$0xff]
    %v77 = vld [vmem:[#allocation2 + $0x10] sm:$0xff]
    %v78 = vld [vmem:[#allocation2 + $0x18] sm:$0xff]
    %v79 = vld [vmem:[#allocation2 + $0x20] sm:$0xff]
    %v80 = vld [vmem:[#allocation2 + $0x28] sm:$0xff]
    %v81 = vld [vmem:[#allocation2 + $0x30] sm:$0xff]
    %v82 = vld [vmem:[#allocation2 + $0x38] sm:$0xff]
    %v83 = vld [vmem:[#allocation2 + $0x40] sm:$0xff]
    %v84 = vld [vmem:[#allocation2 + $0x48] sm:$0xff]
    %v85 = vld [vmem:[#allocation2 + $0x50] sm:$0xff]
    %v86 = vld [vmem:[#allocation2 + $0x58] sm:$0xff]
    %v87 = vld [vmem:[#allocation2 + $0x60] sm:$0xff]
    %v88 = vld [vmem:[#allocation2 + $0x68] sm:$0xff]
    %v89 = vld [vmem:[#allocation2 + $0x70] sm:$0xff]
    %v90 = vld [vmem:[#allocation2 + $0x78] sm:$0xff]
    %v91 = vld [vmem:[%s3] sm:$0x1]
    %v93 = vlaneseq
    %v94 = vshrl.u32 %v93, 7
    %v95 = vsub.s32 0, %v94
    %v96 = vrot.slane %v91, %v95
    %98 = vmatprep.subr.mxu0 0.0
    %99 = vmatpush1.msra.mxu0 %v90
    %100 = vmatprep.subr.mxu0 0.0
    %101 = vmatpush1.msra.mxu0 %v89
    %102 = vmatprep.subr.mxu0 0.0
    %103 = vmatpush1.msra.mxu0 %v88
    %104 = vmatprep.subr.mxu0 0.0
    %105 = vmatpush1.msra.mxu0 %v87
    %106 = vmatprep.subr.mxu0 0.0
    %107 = vmatpush1.msra.mxu0 %v86
    %108 = vmatprep.subr.mxu0 0.0
    %109 = vmatpush1.msra.mxu0 %v85
    %110 = vmatprep.subr.mxu0 0.0
    %111 = vmatpush1.msra.mxu0 %v84
    %112 = vmatprep.subr.mxu0 0.0
    %113 = vmatpush1.msra.mxu0 %v83
    %114 = vmatprep.subr.mxu0 0.0
    %115 = vmatpush1.msra.mxu0 %v82
    %116 = vmatprep.subr.mxu0 0.0
    %117 = vmatpush1.msra.mxu0 %v81
    %118 = vmatprep.subr.mxu0 0.0
    %119 = vmatpush1.msra.mxu0 %v80
    %120 = vmatprep.subr.mxu0 0.0
    %121 = vmatpush1.msra.mxu0 %v79
    %122 = vmatprep.subr.mxu0 0.0
    %123 = vmatpush1.msra.mxu0 %v78
    %124 = vmatprep.subr.mxu0 0.0
    %125 = vmatpush1.msra.mxu0 %v77
    %126 = vmatprep.subr.mxu0 0.0
    %127 = vmatpush1.msra.mxu0 %v76
    %128 = vmatprep.subr.mxu0 0.0
    %129 = vmatpush1.msra.mxu0 %v75
    %130 = vmatprep.subr.mxu0 0.0
    %131 = vmatpush2.msra.mxu0 0.0
    %132 = vmatprep.subr.mxu0 0.0
    %133 = vmatpush2.msra.mxu0 0.0
    %134 = vmatprep.subr.mxu0 0.0
    %135 = vmatpush2.msra.mxu0 0.0
    %136 = vmatprep.subr.mxu0 0.0
    %137 = vmatpush2.msra.mxu0 0.0
    %138 = vmatprep.subr.mxu0 0.0
    %139 = vmatpush2.msra.mxu0 0.0
    %140 = vmatprep.subr.mxu0 0.0
    %141 = vmatpush2.msra.mxu0 0.0
    %142 = vmatprep.subr.mxu0 0.0
    %143 = vmatpush2.msra.mxu0 0.0
    %144 = vmatprep.subr.mxu0 0.0
    %145 = vmatpush2.msra.mxu0 0.0
    %146 = vmatprep.subr.mxu0 0.0
    %147 = vmatpush2.msra.mxu0 0.0
    %148 = vmatprep.subr.mxu0 0.0
    %149 = vmatpush2.msra.mxu0 0.0
    %150 = vmatprep.subr.mxu0 0.0
    %151 = vmatpush2.msra.mxu0 0.0
    %152 = vmatprep.subr.mxu0 0.0
    %153 = vmatpush2.msra.mxu0 0.0
    %154 = vmatprep.subr.mxu0 0.0
    %155 = vmatpush2.msra.mxu0 0.0
    %156 = vmatprep.subr.mxu0 0.0
    %157 = vmatpush2.msra.mxu0 0.0
    %158 = vmatprep.subr.mxu0 0.0
    %159 = vmatpush2.msra.mxu0 0.0
    %160 = vmatprep.subr.mxu0 0.0
    %161 = vmatpush2.msra.mxu0 0.0
    %162 = vmatprep.mubr.f32.mxu0 0.0
    %163 = vmatmul.mubr.f32.gmra.mxu0 %v74
    %v164 = vpop.f32.mrf.mxu0
    %v165 = vadd.f32 %v96, %v164
    %v166 = vpop.f32.mrf.mxu0
    %167 = vdwg.mxu0
    %v168 = vmax.f32 %v165, 0.0
    %v169 = vld [vmem:[#allocation5] sm:$0xff]
    %v170 = vld [vmem:[#allocation5 + $0x8] sm:$0xff]
    %v171 = vld [vmem:[#allocation5 + $0x10] sm:$0xff]
    %v172 = vld [vmem:[#allocation5 + $0x18] sm:$0xff]
    %v173 = vld [vmem:[#allocation5 + $0x20] sm:$0xff]
    %v174 = vld [vmem:[#allocation5 + $0x28] sm:$0xff]
    %v175 = vld [vmem:[#allocation5 + $0x30] sm:$0xff]
    %v176 = vld [vmem:[#allocation5 + $0x38] sm:$0xff]
    %v177 = vld [vmem:[#allocation5 + $0x40] sm:$0xff]
    %v178 = vld [vmem:[#allocation5 + $0x48] sm:$0xff]
    %v179 = vld [vmem:[#allocation5 + $0x50] sm:$0xff]
    %v180 = vld [vmem:[#allocation5 + $0x58] sm:$0xff]
    %v181 = vld [vmem:[#allocation5 + $0x60] sm:$0xff]
    %v182 = vld [vmem:[#allocation5 + $0x68] sm:$0xff]
    %v183 = vld [vmem:[#allocation5 + $0x70] sm:$0xff]
    %v184 = vld [vmem:[#allocation5 + $0x78] sm:$0xff]
    %v185 = vld [vmem:[%s5] sm:$0x1]
    %v187 = vlaneseq
    %v188 = vshrl.u32 %v187, 7
    %v189 = vsub.s32 0, %v188
    %v190 = vrot.slane %v185, %v189
    %192 = vmatprep.subr.mxu0 0.0
    %193 = vmatpush1.msra.mxu0 %v184
    %194 = vmatprep.subr.mxu0 0.0
    %195 = vmatpush1.msra.mxu0 %v183
    %196 = vmatprep.subr.mxu0 0.0
    %197 = vmatpush1.msra.mxu0 %v182
    %198 = vmatprep.subr.mxu0 0.0
    %199 = vmatpush1.msra.mxu0 %v181
    %200 = vmatprep.subr.mxu0 0.0
    %201 = vmatpush1.msra.mxu0 %v180
    %202 = vmatprep.subr.mxu0 0.0
    %203 = vmatpush1.msra.mxu0 %v179
    %204 = vmatprep.subr.mxu0 0.0
    %205 = vmatpush1.msra.mxu0 %v178
    %206 = vmatprep.subr.mxu0 0.0
    %207 = vmatpush1.msra.mxu0 %v177
    %208 = vmatprep.subr.mxu0 0.0
    %209 = vmatpush1.msra.mxu0 %v176
    %210 = vmatprep.subr.mxu0 0.0
    %211 = vmatpush1.msra.mxu0 %v175
    %212 = vmatprep.subr.mxu0 0.0
    %213 = vmatpush1.msra.mxu0 %v174
    %214 = vmatprep.subr.mxu0 0.0
    %215 = vmatpush1.msra.mxu0 %v173
    %216 = vmatprep.subr.mxu0 0.0
    %217 = vmatpush1.msra.mxu0 %v172
    %218 = vmatprep.subr.mxu0 0.0
    %219 = vmatpush1.msra.mxu0 %v171
    %220 = vmatprep.subr.mxu0 0.0
    %221 = vmatpush1.msra.mxu0 %v170
    %222 = vmatprep.subr.mxu0 0.0
    %223 = vmatpush1.msra.mxu0 %v169
    %224 = vmatprep.subr.mxu0 0.0
    %225 = vmatpush2.msra.mxu0 0.0
    %226 = vmatprep.subr.mxu0 0.0
    %227 = vmatpush2.msra.mxu0 0.0
    %228 = vmatprep.subr.mxu0 0.0
    %229 = vmatpush2.msra.mxu0 0.0
    %230 = vmatprep.subr.mxu0 0.0
    %231 = vmatpush2.msra.mxu0 0.0
    %232 = vmatprep.subr.mxu0 0.0
    %233 = vmatpush2.msra.mxu0 0.0
    %234 = vmatprep.subr.mxu0 0.0
    %235 = vmatpush2.msra.mxu0 0.0
    %236 = vmatprep.subr.mxu0 0.0
    %237 = vmatpush2.msra.mxu0 0.0
    %238 = vmatprep.subr.mxu0 0.0
    %239 = vmatpush2.msra.mxu0 0.0
    %240 = vmatprep.subr.mxu0 0.0
    %241 = vmatpush2.msra.mxu0 0.0
    %242 = vmatprep.subr.mxu0 0.0
    %243 = vmatpush2.msra.mxu0 0.0
    %244 = vmatprep.subr.mxu0 0.0
    %245 = vmatpush2.msra.mxu0 0.0
    %246 = vmatprep.subr.mxu0 0.0
    %247 = vmatpush2.msra.mxu0 0.0
    %248 = vmatprep.subr.mxu0 0.0
    %249 = vmatpush2.msra.mxu0 0.0
    %250 = vmatprep.subr.mxu0 0.0
    %251 = vmatpush2.msra.mxu0 0.0
    %252 = vmatprep.subr.mxu0 0.0
    %253 = vmatpush2.msra.mxu0 0.0
    %254 = vmatprep.subr.mxu0 0.0
    %255 = vmatpush2.msra.mxu0 0.0
    %256 = vmatprep.mubr.f32.mxu0 0.0
    %257 = vmatmul.mubr.f32.gmra.mxu0 %v168
    %v258 = vpop.f32.mrf.mxu0
    %v259 = vadd.f32 %v190, %v258
    %v260 = vpop.f32.mrf.mxu0
    %261 = vdwg.mxu0
    %v262 = vmax.f32 %v259, 0.0
    %v263 = vld [vmem:[#allocation7] sm:$0xff]
    %v264 = vld [vmem:[#allocation7 + $0x8] sm:$0xff]
    %v265 = vld [vmem:[#allocation7 + $0x10] sm:$0xff]
    %v266 = vld [vmem:[#allocation7 + $0x18] sm:$0xff]
    %v267 = vld [vmem:[#allocation7 + $0x20] sm:$0xff]
    %v268 = vld [vmem:[#allocation7 + $0x28] sm:$0xff]
    %v269 = vld [vmem:[#allocation7 + $0x30] sm:$0xff]
    %v270 = vld [vmem:[#allocation7 + $0x38] sm:$0xff]
    %v271 = vld [vmem:[#allocation7 + $0x40] sm:$0xff]
    %v272 = vld [vmem:[#allocation7 + $0x48] sm:$0xff]
    %v273 = vld [vmem:[#allocation7 + $0x50] sm:$0xff]
    %v274 = vld [vmem:[#allocation7 + $0x58] sm:$0xff]
    %v275 = vld [vmem:[#allocation7 + $0x60] sm:$0xff]
    %v276 = vld [vmem:[#allocation7 + $0x68] sm:$0xff]
    %v277 = vld [vmem:[#allocation7 + $0x70] sm:$0xff]
    %v278 = vld [vmem:[#allocation7 + $0x78] sm:$0xff]
    %v279 = vld [vmem:[#allocation7 + $0x80] sm:$0xff]
    %v280 = vld [vmem:[#allocation7 + $0x88] sm:$0xff]
    %v281 = vld [vmem:[#allocation7 + $0x90] sm:$0xff]
    %v282 = vld [vmem:[#allocation7 + $0x98] sm:$0xff]
    %v283 = vld [vmem:[#allocation7 + $0xa0] sm:$0xff]
    %v284 = vld [vmem:[#allocation7 + $0xa8] sm:$0xff]
    %v285 = vld [vmem:[#allocation7 + $0xb0] sm:$0xff]
    %v286 = vld [vmem:[#allocation7 + $0xb8] sm:$0xff]
    %v287 = vld [vmem:[#allocation7 + $0xc0] sm:$0xff]
    %v288 = vld [vmem:[#allocation7 + $0xc8] sm:$0xff]
    %v289 = vld [vmem:[#allocation7 + $0xd0] sm:$0xff]
    %v290 = vld [vmem:[#allocation7 + $0xd8] sm:$0xff]
    %v291 = vld [vmem:[#allocation7 + $0xe0] sm:$0xff]
    %v292 = vld [vmem:[#allocation7 + $0xe8] sm:$0xff]
    %v293 = vld [vmem:[#allocation7 + $0xf0] sm:$0xff]
    %v294 = vld [vmem:[#allocation7 + $0xf8] sm:$0xff]
    %v295 = vld [vmem:[%s7] sm:$0x3]
    %v297 = vlaneseq
    %v298 = vshrl.u32 %v297, 7
    %v299 = vsub.s32 0, %v298
    %v300 = vrot.slane %v295, %v299
    %v301 = vlaneseq
    %v302 = vshrl.u32 %v301, 7
    %v303 = vsub.s32 1, %v302
    %v304 = vrot.slane %v295, %v303
    %307 = vmatprep.subr.mxu0 %v294
    %308 = vmatpush1.msra.mxu0 %v293
    %309 = vmatprep.subr.mxu0 %v292
    %310 = vmatpush1.msra.mxu0 %v291
    %311 = vmatprep.subr.mxu0 %v290
    %312 = vmatpush1.msra.mxu0 %v289
    %313 = vmatprep.subr.mxu0 %v288
    %314 = vmatpush1.msra.mxu0 %v287
    %315 = vmatprep.subr.mxu0 %v286
    %316 = vmatpush1.msra.mxu0 %v285
    %317 = vmatprep.subr.mxu0 %v284
    %318 = vmatpush1.msra.mxu0 %v283
    %319 = vmatprep.subr.mxu0 %v282
    %320 = vmatpush1.msra.mxu0 %v281
    %321 = vmatprep.subr.mxu0 %v280
    %322 = vmatpush1.msra.mxu0 %v279
    %323 = vmatprep.subr.mxu0 %v278
    %324 = vmatpush1.msra.mxu0 %v277
    %325 = vmatprep.subr.mxu0 %v276
    %326 = vmatpush1.msra.mxu0 %v275
    %327 = vmatprep.subr.mxu0 %v274
    %328 = vmatpush1.msra.mxu0 %v273
    %329 = vmatprep.subr.mxu0 %v272
    %330 = vmatpush1.msra.mxu0 %v271
    %331 = vmatprep.subr.mxu0 %v270
    %332 = vmatpush1.msra.mxu0 %v269
    %333 = vmatprep.subr.mxu0 %v268
    %334 = vmatpush1.msra.mxu0 %v267
    %335 = vmatprep.subr.mxu0 %v266
    %336 = vmatpush1.msra.mxu0 %v265
    %337 = vmatprep.subr.mxu0 %v264
    %338 = vmatpush1.msra.mxu0 %v263
    %339 = vmatprep.subr.mxu0 0.0
    %340 = vmatpush2.msra.mxu0 0.0
    %341 = vmatprep.subr.mxu0 0.0
    %342 = vmatpush2.msra.mxu0 0.0
    %343 = vmatprep.subr.mxu0 0.0
    %344 = vmatpush2.msra.mxu0 0.0
    %345 = vmatprep.subr.mxu0 0.0
    %346 = vmatpush2.msra.mxu0 0.0
    %347 = vmatprep.subr.mxu0 0.0
    %348 = vmatpush2.msra.mxu0 0.0
    %349 = vmatprep.subr.mxu0 0.0
    %350 = vmatpush2.msra.mxu0 0.0
    %351 = vmatprep.subr.mxu0 0.0
    %352 = vmatpush2.msra.mxu0 0.0
    %353 = vmatprep.subr.mxu0 0.0
    %354 = vmatpush2.msra.mxu0 0.0
    %355 = vmatprep.subr.mxu0 0.0
    %356 = vmatpush2.msra.mxu0 0.0
    %357 = vmatprep.subr.mxu0 0.0
    %358 = vmatpush2.msra.mxu0 0.0
    %359 = vmatprep.subr.mxu0 0.0
    %360 = vmatpush2.msra.mxu0 0.0
    %361 = vmatprep.subr.mxu0 0.0
    %362 = vmatpush2.msra.mxu0 0.0
    %363 = vmatprep.subr.mxu0 0.0
    %364 = vmatpush2.msra.mxu0 0.0
    %365 = vmatprep.subr.mxu0 0.0
    %366 = vmatpush2.msra.mxu0 0.0
    %367 = vmatprep.subr.mxu0 0.0
    %368 = vmatpush2.msra.mxu0 0.0
    %369 = vmatprep.subr.mxu0 0.0
    %370 = vmatpush2.msra.mxu0 0.0
    %371 = vmatprep.mubr.f32.mxu0 0.0
    %372 = vmatmul.mubr.f32.gmra.mxu0 %v262
    %v373 = vpop.f32.mrf.mxu0
    %v374 = vadd.f32 %v300, %v373
    %v375 = vpop.f32.mrf.mxu0
    %v376 = vadd.f32 %v304, %v375
    %377 = vdwg.mxu0
    %v378 = vmax.f32 %v374, %v376
    %379 = vmax.xlane.f32.xlu0 %v378
    %v380 = vpop.xlane.xlu0 %379
    %v381 = vsub.f32 %v374, %v380
    %v382 = vsub.f32 %v376, %v380
    %v383 = vmul.f32 %v381, 1.442695
    %v384 = vpow.pop %v383
    %v385 = vmul.f32 %v382, 1.442695
    %v386 = vpow.pop %v385
    %v387 = vadd.f32 %v384, %v386
    %388 = vadd.xlane.f32.xlu0 %v387
    %v389 = vpop.xlane.xlu0 %388
    %v390 = vrcp.pop %v389
    %v391 = vmul.f32 %v384, %v390
    %v392 = vmul.f32 %v386, %v390
    %v393 = vld [vmem:[%s1] sm:$0xff]
    %v394 = vmul.f32 %v393, 1.442695
    %v395 = vpow.pop %v394
    %397 = vset.pattern.permute.xlu0 0
    %398 = vperm.xlu0 %397, %v395
    %v399 = vpop.permute.xlu0 %398
    %v401 = vmul.f32 %v399, %v391
    %v402 = vmul.f32 %v399, %v392
    %403 = vst [vmem:[#allocation8] sm:$0xff] %v391
    %404 = vst [vmem:[#allocation8 + $0x8] sm:$0xff] %v392
    %405 = vst [vmem:[#allocation9] sm:$0xff] %v401
    %406 = vst [vmem:[#allocation9 + $0x8] sm:$0xff] %v402
    // Predicated region
    $region46: #{tpu_custom_call.1} parent=1 // pred_check
      _
    $region47: #{tpu_custom_call.1} parent=1 // pred_check_branch
      %408 = sbr.rel (0) target = $region49
    $region48: #{tpu_custom_call.1} parent=1 // pred_region
      %s410 = ssub.s32 256, 256
      %411 = vsyncadd [#allocation4], %s410
      %s413 = sshll.u32 [#allocation8], 4
      %s414 = int_to_ptr.vmem [resolvable:$true] %s413
      %416 = dma.vmem_to_hbm [thread:$0]  %s414, 256, %s8, [#allocation4]
    $region49: #{tpu_custom_call.1} parent=1 // pred_fallthru
      _
    // Predicated region
    $region50: #{tpu_custom_call.1} parent=1 // pred_check
      _
    $region51: #{tpu_custom_call.1} parent=1 // pred_check_branch
      %418 = sbr.rel (0) target = $region53
    $region52: #{tpu_custom_call.1} parent=1 // pred_region
      %s420 = ssub.s32 256, 256
      %421 = vsyncadd [#allocation10], %s420
      %s423 = sshll.u32 [#allocation9], 4
      %s424 = int_to_ptr.vmem [resolvable:$true] %s423
      %426 = dma.vmem_to_hbm [thread:$0]  %s424, 256, %s9, [#allocation10]
    $region53: #{tpu_custom_call.1} parent=1 // pred_fallthru
      _
    // Predicated region
    $region54: #{tpu_custom_call.1} parent=1 // pred_check
      _
    $region55: #{tpu_custom_call.1} parent=1 // pred_check_branch
      %428 = sbr.rel (0) target = $region57
    $region56: #{tpu_custom_call.1} parent=1 // pred_region
      %429 = dma.done [#allocation4], 256
    $region57: #{tpu_custom_call.1} parent=1 // pred_fallthru
      _
    // Predicated region
    $region58: #{tpu_custom_call.1} parent=1 // pred_check
      _
    $region59: #{tpu_custom_call.1} parent=1 // pred_check_branch
      %431 = sbr.rel (0) target = $region61
    $region60: #{tpu_custom_call.1} parent=1 // pred_region
      %432 = dma.done [#allocation10], 256
    $region61: #{tpu_custom_call.1} parent=1 // pred_fallthru
      _
    %433 = vsyncpa [#allocation3], 1
    %434 = vsyncpa [#allocation6], 1
    %435 = vsyncpa [#allocation4], 1
    %436 = vsyncpa [#allocation10], 1

</llo_original>
